<compile_context>
chip_gen: v5e
topology: v5e:2x2
jax: 0.10.0
libtpu: 0.0.40
codegen_flags: <defaults>
</compile_context>

<pallas_src>
import math

import jax
import jax.numpy as jnp
from jax import lax
from jax.experimental import pallas as pl
from jax.experimental.pallas import tpu as pltpu

_LANE = 128


def _round_up(x, m):
    return ((x + m - 1) // m) * m


def _cdiv(a, b):
    return -(-a // b)


def _vmem_capacity_bytes():
    """Physical VMEM of the attached TPU (fallback: v7x's 64 MiB per core)."""
    try:
        cap = getattr(pltpu.get_tpu_info(), "vmem_capacity_bytes", None)
        if cap:
            return int(cap)
    except Exception:
        pass
    return 64 << 20


def scl_forward(img, text, params, *, max_tile=512, tk=512):
    """Fused SCL forward: returns (v1_feat, v2_feat, v1_pred, v2_pred)."""
    batch = img.shape[0]
    assert text.shape[0] == batch

    w_img, b_img = params["w_img"], params["b_img"]
    w_text, b_text = params["w_text"], params["b_text"]
    w_l1, b_l1 = params["w_l1"], params["b_l1"]
    w_cls, b_cls = params["w_cls"], params["b_cls"]

    img_dim = w_img.shape[0]
    text_dim = w_text.shape[0]
    common2 = w_l1.shape[0]
    common = w_l1.shape[1]
    class_num = w_cls.shape[1]
    cls_pad = _round_up(class_num, _LANE)

    # ---- K tiling of the two branch projections (their weights are streamed).
    kmax = max(img_dim, text_dim)
    tk = min(tk, _round_up(kmax, _LANE))          # lane-aligned K chunk
    k_img_pad = _round_up(img_dim, tk)
    k_text_pad = _round_up(text_dim, tk)
    nk_img = k_img_pad // tk
    nk_text = k_text_pad // tk
    nk = max(nk_img, nk_text)

    bf = jnp.bfloat16

    # bf16 weights (MXU-native operands, half the VMEM/HBM); f32 biases.
    # Zero-pad K so padded chunks contribute exactly 0; lane-pad the classifier
    # so pred stores are lane dense (sliced back below).
    w_img_p = jnp.pad(w_img, ((0, k_img_pad - img_dim), (0, 0))).astype(bf)
    w_text_p = jnp.pad(w_text, ((0, k_text_pad - text_dim), (0, 0))).astype(bf)
    w_l1_b = w_l1.astype(bf)
    w_cls_p = jnp.zeros((common, cls_pad), bf).at[:, :class_num].set(w_cls.astype(bf))
    b_cls_p = jnp.zeros((1, cls_pad), jnp.float32).at[:, :class_num].set(b_cls)

    # ---- per-generation VMEM budget and batch-tile sizing.
    cap = _vmem_capacity_bytes()
    vmem_budget = (cap // 4) * 3
    vmem_limit = (cap // 8) * 7

    bp16, bp32 = 2, 4
    resident_bytes = (bp16 * (common2 * common + common * cls_pad)   # wl1, wcls (single-buffered)
                      + bp32 * (2 * common2 + common + cls_pad))     # biases (f32)
    stream_w_bytes = 2 * 2 * tk * common2 * bp16                     # w_img/w_text K-slabs, dbl-buffered
    per_row_bytes = (
        2 * 2 * tk * bp16                          # img + text x tiles (dbl-buffered)
        + 2 * 2 * (common + cls_pad) * bp32        # 4 f32 output tiles (dbl-buffered)
        + 2 * common2 * bp32                       # h_acc scratch (2 stacked rows / batch row)
        + 2 * (common + cls_pad) * bp32            # f / p intermediates
        + 2 * (common2 + common) * bp16            # bf16 MXU operand casts
    )
    avail = vmem_budget - resident_bytes - stream_w_bytes - (2 << 20)
    tm = max(_LANE, min(max_tile, avail // per_row_bytes))   # MXU-friendly floor
    tm = (tm // 8) * 8

    # Guarantee >= 2 batch tiles when the batch is big enough so the "parallel"
    # batch axis can be sharded across v7x's two TensorCores.
    b_rows = _round_up(batch, 8)
    if b_rows < 2 * tm:
        if b_rows >= 2 * _LANE:
            tm = _round_up(_cdiv(b_rows, 2), 8)
        else:
            tm = b_rows

    b_pad = _round_up(batch, tm)
    # Inputs: cast to bf16 + row/K pad (XLA fuses pad+cast into one copy).
    # TODO(synk): a masked ragged last batch tile would avoid the row pad entirely.
    img_p = jnp.pad(img, ((0, b_pad - batch), (0, k_img_pad - img_dim))).astype(bf)
    text_p = jnp.pad(text, ((0, b_pad - batch), (0, k_text_pad - text_dim))).astype(bf)

    grid = (b_pad // tm, nk)

    # ---- kernel (closure over nk_img / nk_text / nk, all Python ints).
    def kernel(xi_ref, xt_ref, wi_ref, bi_ref, wt_ref, bt_ref,
               wl1_ref, bl1_ref, wc_ref, bc_ref,
               f1_ref, f2_ref, p1_ref, p2_ref, h_acc):
        tm_ = xi_ref.shape[0]
        k = pl.program_id(1)

        @pl.when(k == 0)
        def _init():
            h_acc[...] = jnp.zeros_like(h_acc)

        # Streamed K-chunk of each branch projection (bf16 operands, f32 accum).
        # Chunks past a branch's padded width are skipped (index_map clamps the
        # block, so no extra DMA either).
        @pl.when(k < nk_img)
        def _img():
            h_acc[0:tm_, :] += jnp.dot(xi_ref[...], wi_ref[...],
                                       preferred_element_type=jnp.float32)

        @pl.when(k < nk_text)
        def _text():
            h_acc[tm_:2 * tm_, :] += jnp.dot(xt_ref[...], wt_ref[...],
                                             preferred_element_type=jnp.float32)

        @pl.when(k == nk - 1)
        def _finalize():
            # Dropout layers are identity in eval mode.
            # Bias + ReLU written straight back into the stacked scratch
            # (no jnp.concatenate -> no extra [2*tm, 2C] VMEM copy).
            h_acc[0:tm_, :] = jnp.maximum(h_acc[0:tm_, :] + bi_ref[...], 0.0)
            h_acc[tm_:2 * tm_, :] = jnp.maximum(h_acc[tm_:2 * tm_, :] + bt_ref[...], 0.0)

            # Shared l1 on both views at once (2*tm MXU rows, weights used once).
            h16 = h_acc[...].astype(jnp.bfloat16)
            f = jnp.dot(h16, wl1_ref[...],
                        preferred_element_type=jnp.float32) + bl1_ref[...]
            f = jnp.maximum(f, 0.0)

            # L2 norm over the feature dim (rsqrt -> EUP slot, mul -> VPU).
            # Matches the reference's 0/0 behavior for an all-zero row.
            sq = jnp.sum(f * f, axis=1, keepdims=True)
            f = f * lax.rsqrt(sq)

            # Label classifier on lane-padded weights: unmasked, lane-dense stores.
            p = jnp.dot(f.astype(jnp.bfloat16), wc_ref[...],
                        preferred_element_type=jnp.float32) + bc_ref[...]

            f1_ref[...] = f[0:tm_]
            f2_ref[...] = f[tm_:]
            p1_ref[...] = p[0:tm_]
            p2_ref[...] = p[tm_:]

    rows_out = lambda i, k: (i, 0)
    resident = lambda i, k: (0, 0)
    img_x = lambda i, k: (i, jnp.minimum(k, nk_img - 1))
    text_x = lambda i, k: (i, jnp.minimum(k, nk_text - 1))
    img_w = lambda i, k: (jnp.minimum(k, nk_img - 1), 0)
    text_w = lambda i, k: (jnp.minimum(k, nk_text - 1), 0)

    def wspec(a):
        # Resident weights/biases: same block every step + single-buffered.
        return pl.BlockSpec(a.shape, resident, pipeline_mode=pl.Buffered(1))

    # Advisory cost estimate so XLA can overlap surrounding ops.
    n_bt = b_pad // tm
    flops = (2 * b_pad * common2 * (k_img_pad + k_text_pad)
             + 2 * (2 * b_pad) * common2 * common
             + 2 * (2 * b_pad) * common * cls_pad)
    bytes_accessed = (
        bp16 * b_pad * (k_img_pad + k_text_pad)                   # inputs
        + bp16 * n_bt * (k_img_pad + k_text_pad) * common2        # streamed weights
        + bp16 * (common2 * common + common * cls_pad)            # resident weights
        + bp32 * (2 * common2 + common + cls_pad)                 # biases
        + bp32 * 2 * b_pad * (common + cls_pad))                  # outputs
    cost = pl.CostEstimate(flops=int(flops), transcendentals=int(2 * b_pad),
                           bytes_accessed=int(bytes_accessed))

    f1, f2, p1, p2 = pl.pallas_call(
        kernel,
        grid=grid,
        in_specs=[
            pl.BlockSpec((tm, tk), img_x),
            pl.BlockSpec((tm, tk), text_x),
            pl.BlockSpec((tk, common2), img_w), wspec(b_img),
            pl.BlockSpec((tk, common2), text_w), wspec(b_text),
            wspec(w_l1_b), wspec(b_l1),
            wspec(w_cls_p), wspec(b_cls_p),
        ],
        out_specs=(
            pl.BlockSpec((tm, common), rows_out),
            pl.BlockSpec((tm, common), rows_out),
            pl.BlockSpec((tm, cls_pad), rows_out),
            pl.BlockSpec((tm, cls_pad), rows_out),
        ),
        out_shape=(
            jax.ShapeDtypeStruct((b_pad, common), jnp.float32),
            jax.ShapeDtypeStruct((b_pad, common), jnp.float32),
            jax.ShapeDtypeStruct((b_pad, cls_pad), jnp.float32),
            jax.ShapeDtypeStruct((b_pad, cls_pad), jnp.float32),
        ),
        scratch_shapes=[pltpu.VMEM((2 * tm, common2), jnp.float32)],
        compiler_params=pltpu.CompilerParams(
            dimension_semantics=("parallel", "arbitrary"),
            vmem_limit_bytes=int(vmem_limit)),
        cost_estimate=cost,
    )(img_p, text_p, w_img_p, b_img, w_text_p, b_text,
      w_l1_b, b_l1, w_cls_p, b_cls_p)

    return (f1[:batch], f2[:batch],
            p1[:batch, :class_num], p2[:batch, :class_num])


# ----------------------------- init / reference -----------------------------

def xavier_uniform(key, fan_in, fan_out):
    bound = math.sqrt(6.0 / (fan_in + fan_out))
    return jax.random.uniform(key, (fan_in, fan_out), jnp.float32, -bound, bound)


def linear_bias(key, fan_in, fan_out):
    # PyTorch default Linear bias init: U(-1/sqrt(fan_in), 1/sqrt(fan_in))
    bound = 1.0 / math.sqrt(fan_in)
    return jax.random.uniform(key, (1, fan_out), jnp.float32, -bound, bound)


def scl_reference_f32(img, text, params):
    """Exact f32 forward of the PyTorch module (eval mode)."""
    def branch(x, w, b):
        h = jnp.maximum(x @ w + b, 0.0)
        f = jnp.maximum(h @ params["w_l1"] + params["b_l1"], 0.0)
        f = f / jnp.sqrt(jnp.sum(f * f, axis=1, keepdims=True))
        p = f @ params["w_cls"] + params["b_cls"]
        return f, p
    f1, p1 = branch(img, params["w_img"], params["b_img"])
    f2, p2 = branch(text, params["w_text"], params["b_text"])
    return f1, f2, p1, p2


def scl_reference_bf16(img, text, params):
    """Reference with the same bf16-operand / f32-accumulate precision as the kernel."""
    bf = jnp.bfloat16

    def mm(a, b):
        return jnp.dot(a.astype(bf), b.astype(bf), preferred_element_type=jnp.float32)

    def branch(x, w, b):
        h = jnp.maximum(mm(x, w) + b, 0.0)
        f = jnp.maximum(mm(h, params["w_l1"]) + params["b_l1"], 0.0)
        f = f * lax.rsqrt(jnp.sum(f * f, axis=1, keepdims=True))
        p = mm(f, params["w_cls"]) + params["b_cls"]
        return f, p
    f1, p1 = branch(img, params["w_img"], params["b_img"])
    f2, p2 = branch(text, params["w_text"], params["b_text"])
    return f1, f2, p1, p2


if __name__ == "__main__":
    # Small shapes consistent with the module (scaled down from 4096/5000/1024/10).
    batch = 8
    img_input_dim = 128
    text_input_dim = 256
    common_emb_dim = 128
    class_num = 10

    key = jax.random.PRNGKey(0)
    keys = jax.random.split(key, 10)

    params = {
        "w_img":  xavier_uniform(keys[0], img_input_dim, common_emb_dim * 2),
        "b_img":  linear_bias(keys[1], img_input_dim, common_emb_dim * 2),
        "w_text": xavier_uniform(keys[2], text_input_dim, common_emb_dim * 2),
        "b_text": linear_bias(keys[3], text_input_dim, common_emb_dim * 2),
        "w_l1":   xavier_uniform(keys[4], common_emb_dim * 2, common_emb_dim),
        "b_l1":   linear_bias(keys[5], common_emb_dim * 2, common_emb_dim),
        "w_cls":  xavier_uniform(keys[6], common_emb_dim, class_num),
        "b_cls":  linear_bias(keys[7], common_emb_dim, class_num),
    }

    img = jax.random.normal(keys[8], (batch, img_input_dim), jnp.float32)
    text = jax.random.normal(keys[9], (batch, text_input_dim), jnp.float32)

    outs = scl_forward(img, text, params)
    jax.block_until_ready(outs)
    v1_feat, v2_feat, v1_pred, v2_pred = outs

    assert v1_feat.shape == (batch, common_emb_dim)
    assert v2_feat.shape == (batch, common_emb_dim)
    assert v1_pred.shape == (batch, class_num)
    assert v2_pred.shape == (batch, class_num)

    # Kernel math vs a reference using the same bf16-operand / f32-accum precision.
    refs_bf16 = scl_reference_bf16(img, text, params)
    for got, want in zip(outs, refs_bf16):
        assert jnp.allclose(got, want, atol=2e-3, rtol=2e-3), "mismatch vs bf16 reference"

    # Loose check against the exact f32 PyTorch-semantics forward
    # (difference is purely the bf16 matmul operands).
    refs_f32 = scl_reference_f32(img, text, params)
    for got, want in zip(outs, refs_f32):
        assert jnp.allclose(got, want, atol=3e-2, rtol=3e-2), "mismatch vs f32 reference"

    # TODO(synk): Dropout layers implemented as identity (eval-mode semantics);
    # training-mode dropout would need pltpu.prng_random_bits masking.
    print("KERNEL_OK")
</pallas_src>

<mosaic_0001>
module attributes {stable_mosaic.version = 11 : i64} {
  func.func @kernel(%arg0: i32, %arg1: i32, %arg2: memref<8x256xbf16, #tpu.memory_space<vmem>>, %arg3: memref<8x256xbf16, #tpu.memory_space<vmem>>, %arg4: memref<256x256xbf16, #tpu.memory_space<vmem>>, %arg5: memref<1x256xf32, #tpu.memory_space<vmem>>, %arg6: memref<256x256xbf16, #tpu.memory_space<vmem>>, %arg7: memref<1x256xf32, #tpu.memory_space<vmem>>, %arg8: memref<256x128xbf16, #tpu.memory_space<vmem>>, %arg9: memref<1x128xf32, #tpu.memory_space<vmem>>, %arg10: memref<128x128xbf16, #tpu.memory_space<vmem>>, %arg11: memref<1x128xf32, #tpu.memory_space<vmem>>, %arg12: memref<8x128xf32, #tpu.memory_space<vmem>>, %arg13: memref<8x128xf32, #tpu.memory_space<vmem>>, %arg14: memref<8x128xf32, #tpu.memory_space<vmem>>, %arg15: memref<8x128xf32, #tpu.memory_space<vmem>>, %arg16: memref<16x256xf32, #tpu.memory_space<vmem>>) attributes {dimension_semantics = [#tpu.dimension_semantics<parallel>, #tpu.dimension_semantics<arbitrary>], iteration_bounds = array<i64: 1, 1>, scalar_prefetch = 0 : i64, scratch_operands = 1 : i64, tpu.core_type = #tpu.core_type<tc>, window_params = [{transform_indices = @transform_0, window_bounds = array<i64: 8, 256>}, {transform_indices = @transform_1, window_bounds = array<i64: 8, 256>}, {transform_indices = @transform_2, window_bounds = array<i64: 256, 256>}, {pipeline_mode = #tpu.pipeline_mode<synchronous>, transform_indices = @transform_3, window_bounds = array<i64: 1, 256>}, {transform_indices = @transform_4, window_bounds = array<i64: 256, 256>}, {pipeline_mode = #tpu.pipeline_mode<synchronous>, transform_indices = @transform_5, window_bounds = array<i64: 1, 256>}, {pipeline_mode = #tpu.pipeline_mode<synchronous>, transform_indices = @transform_6, window_bounds = array<i64: 256, 128>}, {pipeline_mode = #tpu.pipeline_mode<synchronous>, transform_indices = @transform_7, window_bounds = array<i64: 1, 128>}, {pipeline_mode = #tpu.pipeline_mode<synchronous>, transform_indices = @transform_8, window_bounds = array<i64: 128, 128>}, {pipeline_mode = #tpu.pipeline_mode<synchronous>, transform_indices = @transform_9, window_bounds = array<i64: 1, 128>}, {transform_indices = @transform_10, window_bounds = array<i64: 8, 128>}, {transform_indices = @transform_11, window_bounds = array<i64: 8, 128>}, {transform_indices = @transform_12, window_bounds = array<i64: 8, 128>}, {transform_indices = @transform_13, window_bounds = array<i64: 8, 128>}]} {
    %c0_i32 = arith.constant 0 : i32
    %0 = arith.cmpi eq, %arg1, %c0_i32 : i32
    %1 = arith.extui %0 : i1 to i32
    %c0_i32_0 = arith.constant 0 : i32
    %2 = arith.cmpi ne, %1, %c0_i32_0 : i32
    scf.if %2 {
      %cst = arith.constant 0.000000e+00 : f32
      %12 = vector.broadcast %cst : f32 to vector<16x256xf32>
      %c0 = arith.constant 0 : index
      %c0_6 = arith.constant 0 : index
      %13 = vector.load %arg16[%c0, %c0_6] : memref<16x256xf32, #tpu.memory_space<vmem>>, vector<16x256xf32>
      tpu.vector_store %arg16[%c0, %c0_6], %12 {strides = array<i32>} : memref<16x256xf32, #tpu.memory_space<vmem>>, vector<16x256xf32>,
    } else {
    }
    %c1_i32 = arith.constant 1 : i32
    %3 = arith.cmpi slt, %arg1, %c1_i32 : i32
    %4 = arith.extui %3 : i1 to i32
    %c0_i32_1 = arith.constant 0 : i32
    %5 = arith.cmpi ne, %4, %c0_i32_1 : i32
    scf.if %5 {
      %c0 = arith.constant 0 : index
      %c0_6 = arith.constant 0 : index
      %12 = vector.load %arg16[%c0, %c0_6] : memref<16x256xf32, #tpu.memory_space<vmem>>, vector<8x256xf32>
      %c0_7 = arith.constant 0 : index
      %c0_8 = arith.constant 0 : index
      %13 = vector.load %arg2[%c0_7, %c0_8] : memref<8x256xbf16, #tpu.memory_space<vmem>>, vector<8x256xbf16>
      %c0_9 = arith.constant 0 : index
      %c0_10 = arith.constant 0 : index
      %14 = vector.load %arg4[%c0_9, %c0_10] : memref<256x256xbf16, #tpu.memory_space<vmem>>, vector<256x256xbf16>
      %cst = arith.constant dense<0.000000e+00> : vector<8x256xf32>
      %15 = tpu.matmul %13, %14, %cst {dimension_numbers = #tpu.dot_dimension_numbers<[1], [0], [0], [1], [0, 0, 1, 1], [], []>} : vector<8x256xbf16>, vector<256x256xbf16>, vector<8x256xf32> -> vector<8x256xf32>
      %16 = arith.addf %12, %15 : vector<8x256xf32>
      %c0_11 = arith.constant 0 : index
      %c0_12 = arith.constant 0 : index
      %17 = vector.load %arg16[%c0_11, %c0_12] : memref<16x256xf32, #tpu.memory_space<vmem>>, vector<8x256xf32>
      tpu.vector_store %arg16[%c0_11, %c0_12], %16 {strides = array<i32>} : memref<16x256xf32, #tpu.memory_space<vmem>>, vector<8x256xf32>,
    } else {
    }
    %c1_i32_2 = arith.constant 1 : i32
    %6 = arith.cmpi slt, %arg1, %c1_i32_2 : i32
    %7 = arith.extui %6 : i1 to i32
    %c0_i32_3 = arith.constant 0 : i32
    %8 = arith.cmpi ne, %7, %c0_i32_3 : i32
    scf.if %8 {
      %c8 = arith.constant 8 : index
      %c0 = arith.constant 0 : index
      %12 = vector.load %arg16[%c8, %c0] : memref<16x256xf32, #tpu.memory_space<vmem>>, vector<8x256xf32>
      %c0_6 = arith.constant 0 : index
      %c0_7 = arith.constant 0 : index
      %13 = vector.load %arg3[%c0_6, %c0_7] : memref<8x256xbf16, #tpu.memory_space<vmem>>, vector<8x256xbf16>
      %c0_8 = arith.constant 0 : index
      %c0_9 = arith.constant 0 : index
      %14 = vector.load %arg6[%c0_8, %c0_9] : memref<256x256xbf16, #tpu.memory_space<vmem>>, vector<256x256xbf16>
      %cst = arith.constant dense<0.000000e+00> : vector<8x256xf32>
      %15 = tpu.matmul %13, %14, %cst {dimension_numbers = #tpu.dot_dimension_numbers<[1], [0], [0], [1], [0, 0, 1, 1], [], []>} : vector<8x256xbf16>, vector<256x256xbf16>, vector<8x256xf32> -> vector<8x256xf32>
      %16 = arith.addf %12, %15 : vector<8x256xf32>
      %c8_10 = arith.constant 8 : index
      %c0_11 = arith.constant 0 : index
      %17 = vector.load %arg16[%c8_10, %c0_11] : memref<16x256xf32, #tpu.memory_space<vmem>>, vector<8x256xf32>
      tpu.vector_store %arg16[%c8_10, %c0_11], %16 {strides = array<i32>} : memref<16x256xf32, #tpu.memory_space<vmem>>, vector<8x256xf32>,
    } else {
    }
    %c0_i32_4 = arith.constant 0 : i32
    %9 = arith.cmpi eq, %arg1, %c0_i32_4 : i32
    %10 = arith.extui %9 : i1 to i32
    %c0_i32_5 = arith.constant 0 : i32
    %11 = arith.cmpi ne, %10, %c0_i32_5 : i32
    scf.if %11 {
      %c0 = arith.constant 0 : index
      %c0_6 = arith.constant 0 : index
      %12 = vector.load %arg16[%c0, %c0_6] : memref<16x256xf32, #tpu.memory_space<vmem>>, vector<8x256xf32>
      %c0_7 = arith.constant 0 : index
      %c0_8 = arith.constant 0 : index
      %13 = vector.load %arg5[%c0_7, %c0_8] : memref<1x256xf32, #tpu.memory_space<vmem>>, vector<1x256xf32>
      %14 = vector.broadcast %13 : vector<1x256xf32> to vector<8x256xf32>
      %15 = arith.addf %12, %14 : vector<8x256xf32>
      %cst = arith.constant 0.000000e+00 : f32
      %16 = vector.broadcast %cst : f32 to vector<8x256xf32>
      %17 = arith.maximumf %15, %16 : vector<8x256xf32>
      %c0_9 = arith.constant 0 : index
      %c0_10 = arith.constant 0 : index
      %18 = vector.load %arg16[%c0_9, %c0_10] : memref<16x256xf32, #tpu.memory_space<vmem>>, vector<8x256xf32>
      tpu.vector_store %arg16[%c0_9, %c0_10], %17 {strides = array<i32>} : memref<16x256xf32, #tpu.memory_space<vmem>>, vector<8x256xf32>,
      %c8 = arith.constant 8 : index
      %c0_11 = arith.constant 0 : index
      %19 = vector.load %arg16[%c8, %c0_11] : memref<16x256xf32, #tpu.memory_space<vmem>>, vector<8x256xf32>
      %c0_12 = arith.constant 0 : index
      %c0_13 = arith.constant 0 : index
      %20 = vector.load %arg7[%c0_12, %c0_13] : memref<1x256xf32, #tpu.memory_space<vmem>>, vector<1x256xf32>
      %21 = vector.broadcast %20 : vector<1x256xf32> to vector<8x256xf32>
      %22 = arith.addf %19, %21 : vector<8x256xf32>
      %cst_14 = arith.constant 0.000000e+00 : f32
      %23 = vector.broadcast %cst_14 : f32 to vector<8x256xf32>
      %24 = arith.maximumf %22, %23 : vector<8x256xf32>
      %c8_15 = arith.constant 8 : index
      %c0_16 = arith.constant 0 : index
      %25 = vector.load %arg16[%c8_15, %c0_16] : memref<16x256xf32, #tpu.memory_space<vmem>>, vector<8x256xf32>
      tpu.vector_store %arg16[%c8_15, %c0_16], %24 {strides = array<i32>} : memref<16x256xf32, #tpu.memory_space<vmem>>, vector<8x256xf32>,
      %c0_17 = arith.constant 0 : index
      %c0_18 = arith.constant 0 : index
      %26 = vector.load %arg16[%c0_17, %c0_18] : memref<16x256xf32, #tpu.memory_space<vmem>>, vector<16x256xf32>
      %27 = arith.truncf %26 : vector<16x256xf32> to vector<16x256xbf16>
      %c0_19 = arith.constant 0 : index
      %c0_20 = arith.constant 0 : index
      %28 = vector.load %arg8[%c0_19, %c0_20] : memref<256x128xbf16, #tpu.memory_space<vmem>>, vector<256x128xbf16>
      %cst_21 = arith.constant dense<0.000000e+00> : vector<16x128xf32>
      %29 = tpu.matmul %27, %28, %cst_21 {dimension_numbers = #tpu.dot_dimension_numbers<[1], [0], [0], [1], [0, 0, 1, 1], [], []>} : vector<16x256xbf16>, vector<256x128xbf16>, vector<16x128xf32> -> vector<16x128xf32>
      %c0_22 = arith.constant 0 : index
      %c0_23 = arith.constant 0 : index
      %30 = vector.load %arg9[%c0_22, %c0_23] : memref<1x128xf32, #tpu.memory_space<vmem>>, vector<1x128xf32>
      %31 = vector.broadcast %30 : vector<1x128xf32> to vector<16x128xf32>
      %32 = arith.addf %29, %31 : vector<16x128xf32>
      %cst_24 = arith.constant 0.000000e+00 : f32
      %33 = vector.broadcast %cst_24 : f32 to vector<16x128xf32>
      %34 = arith.maximumf %32, %33 : vector<16x128xf32>
      %35 = arith.mulf %34, %34 : vector<16x128xf32>
      %cst_25 = arith.constant dense<0.000000e+00> : vector<16xf32>
      %36 = vector.multi_reduction <add>, %35, %cst_25 [1] : vector<16x128xf32> to vector<16xf32>
      %37 = vector.shape_cast %36 : vector<16xf32> to vector<16x1xf32>
      %38 = math.rsqrt %37 : vector<16x1xf32>
      %39 = vector.broadcast %38 : vector<16x1xf32> to vector<16x128xf32>
      %40 = arith.mulf %34, %39 : vector<16x128xf32>
      %41 = arith.truncf %40 : vector<16x128xf32> to vector<16x128xbf16>
      %c0_26 = arith.constant 0 : index
      %c0_27 = arith.constant 0 : index
      %42 = vector.load %arg10[%c0_26, %c0_27] : memref<128x128xbf16, #tpu.memory_space<vmem>>, vector<128x128xbf16>
      %cst_28 = arith.constant dense<0.000000e+00> : vector<16x128xf32>
      %43 = tpu.matmul %41, %42, %cst_28 {dimension_numbers = #tpu.dot_dimension_numbers<[1], [0], [0], [1], [0, 0, 1, 1], [], []>} : vector<16x128xbf16>, vector<128x128xbf16>, vector<16x128xf32> -> vector<16x128xf32>
      %c0_29 = arith.constant 0 : index
      %c0_30 = arith.constant 0 : index
      %44 = vector.load %arg11[%c0_29, %c0_30] : memref<1x128xf32, #tpu.memory_space<vmem>>, vector<1x128xf32>
      %45 = vector.broadcast %44 : vector<1x128xf32> to vector<16x128xf32>
      %46 = arith.addf %43, %45 : vector<16x128xf32>
      %47 = vector.extract_strided_slice %40 {offsets = [0, 0], sizes = [8, 128], strides = [1, 1]} : vector<16x128xf32> to vector<8x128xf32>
      %c0_31 = arith.constant 0 : index
      %c0_32 = arith.constant 0 : index
      %48 = vector.load %arg12[%c0_31, %c0_32] : memref<8x128xf32, #tpu.memory_space<vmem>>, vector<8x128xf32>
      tpu.vector_store %arg12[%c0_31, %c0_32], %47 {strides = array<i32>} : memref<8x128xf32, #tpu.memory_space<vmem>>, vector<8x128xf32>,
      %49 = vector.extract_strided_slice %40 {offsets = [8, 0], sizes = [8, 128], strides = [1, 1]} : vector<16x128xf32> to vector<8x128xf32>
      %c0_33 = arith.constant 0 : index
      %c0_34 = arith.constant 0 : index
      %50 = vector.load %arg13[%c0_33, %c0_34] : memref<8x128xf32, #tpu.memory_space<vmem>>, vector<8x128xf32>
      tpu.vector_store %arg13[%c0_33, %c0_34], %49 {strides = array<i32>} : memref<8x128xf32, #tpu.memory_space<vmem>>, vector<8x128xf32>,
      %51 = vector.extract_strided_slice %46 {offsets = [0, 0], sizes = [8, 128], strides = [1, 1]} : vector<16x128xf32> to vector<8x128xf32>
      %c0_35 = arith.constant 0 : index
      %c0_36 = arith.constant 0 : index
      %52 = vector.load %arg14[%c0_35, %c0_36] : memref<8x128xf32, #tpu.memory_space<vmem>>, vector<8x128xf32>
      tpu.vector_store %arg14[%c0_35, %c0_36], %51 {strides = array<i32>} : memref<8x128xf32, #tpu.memory_space<vmem>>, vector<8x128xf32>,
      %53 = vector.extract_strided_slice %46 {offsets = [8, 0], sizes = [8, 128], strides = [1, 1]} : vector<16x128xf32> to vector<8x128xf32>
      %c0_37 = arith.constant 0 : index
      %c0_38 = arith.constant 0 : index
      %54 = vector.load %arg15[%c0_37, %c0_38] : memref<8x128xf32, #tpu.memory_space<vmem>>, vector<8x128xf32>
      tpu.vector_store %arg15[%c0_37, %c0_38], %53 {strides = array<i32>} : memref<8x128xf32, #tpu.memory_space<vmem>>, vector<8x128xf32>,
    } else {
    }
    return
  }
  func.func @transform_0(%arg0: i32, %arg1: i32) -> (i32, i32) {
    %c0_i32 = arith.constant 0 : i32
    %0 = arith.minsi %arg1, %c0_i32 : i32
    %c0_i32_0 = arith.constant 0 : i32
    return %arg0, %0 : i32, i32
  }
  func.func @transform_1(%arg0: i32, %arg1: i32) -> (i32, i32) {
    %c0_i32 = arith.constant 0 : i32
    %0 = arith.minsi %arg1, %c0_i32 : i32
    %c0_i32_0 = arith.constant 0 : i32
    return %arg0, %0 : i32, i32
  }
  func.func @transform_2(%arg0: i32, %arg1: i32) -> (i32, i32) {
    %c0_i32 = arith.constant 0 : i32
    %0 = arith.minsi %arg1, %c0_i32 : i32
    %c0_i32_0 = arith.constant 0 : i32
    %c0_i32_1 = arith.constant 0 : i32
    return %0, %c0_i32_0 : i32, i32
  }
  func.func @transform_3(%arg0: i32, %arg1: i32) -> (i32, i32) {
    %c0_i32 = arith.constant 0 : i32
    %c0_i32_0 = arith.constant 0 : i32
    %c0_i32_1 = arith.constant 0 : i32
    return %c0_i32, %c0_i32_0 : i32, i32
  }
  func.func @transform_4(%arg0: i32, %arg1: i32) -> (i32, i32) {
    %c0_i32 = arith.constant 0 : i32
    %0 = arith.minsi %arg1, %c0_i32 : i32
    %c0_i32_0 = arith.constant 0 : i32
    %c0_i32_1 = arith.constant 0 : i32
    return %0, %c0_i32_0 : i32, i32
  }
  func.func @transform_5(%arg0: i32, %arg1: i32) -> (i32, i32) {
    %c0_i32 = arith.constant 0 : i32
    %c0_i32_0 = arith.constant 0 : i32
    %c0_i32_1 = arith.constant 0 : i32
    return %c0_i32, %c0_i32_0 : i32, i32
  }
  func.func @transform_6(%arg0: i32, %arg1: i32) -> (i32, i32) {
    %c0_i32 = arith.constant 0 : i32
    %c0_i32_0 = arith.constant 0 : i32
    %c0_i32_1 = arith.constant 0 : i32
    return %c0_i32, %c0_i32_0 : i32, i32
  }
  func.func @transform_7(%arg0: i32, %arg1: i32) -> (i32, i32) {
    %c0_i32 = arith.constant 0 : i32
    %c0_i32_0 = arith.constant 0 : i32
    %c0_i32_1 = arith.constant 0 : i32
    return %c0_i32, %c0_i32_0 : i32, i32
  }
  func.func @transform_8(%arg0: i32, %arg1: i32) -> (i32, i32) {
    %c0_i32 = arith.constant 0 : i32
    %c0_i32_0 = arith.constant 0 : i32
    %c0_i32_1 = arith.constant 0 : i32
    return %c0_i32, %c0_i32_0 : i32, i32
  }
  func.func @transform_9(%arg0: i32, %arg1: i32) -> (i32, i32) {
    %c0_i32 = arith.constant 0 : i32
    %c0_i32_0 = arith.constant 0 : i32
    %c0_i32_1 = arith.constant 0 : i32
    return %c0_i32, %c0_i32_0 : i32, i32
  }
  func.func @transform_10(%arg0: i32, %arg1: i32) -> (i32, i32) {
    %c0_i32 = arith.constant 0 : i32
    %c0_i32_0 = arith.constant 0 : i32
    return %arg0, %c0_i32 : i32, i32
  }
  func.func @transform_11(%arg0: i32, %arg1: i32) -> (i32, i32) {
    %c0_i32 = arith.constant 0 : i32
    %c0_i32_0 = arith.constant 0 : i32
    return %arg0, %c0_i32 : i32, i32
  }
  func.func @transform_12(%arg0: i32, %arg1: i32) -> (i32, i32) {
    %c0_i32 = arith.constant 0 : i32
    %c0_i32_0 = arith.constant 0 : i32
    return %arg0, %c0_i32 : i32, i32
  }
  func.func @transform_13(%arg0: i32, %arg1: i32) -> (i32, i32) {
    %c0_i32 = arith.constant 0 : i32
    %c0_i32_0 = arith.constant 0 : i32
    return %arg0, %c0_i32 : i32, i32
  }
}

</mosaic_0001>

<llo_original>
// kernel: tpu_custom_call.1
$region0: #{tpu_custom_call.1}
  #allocation0 [shape = 'u32[]', space=smem, size = 0x4, offset = 0x4, fixed_abs, tag = 'smem constant byte address 0x4 - core index']
  #allocation1 [shape = 'u32[72,128]{1,0:T(1,128)}', space=vmem, size = 0x9000, scoped, tag = 'internal scratch']
  #allocation2 [shape = 'f32[16,256]{1,0:T(8,128)}', space=vmem, size = 0x4000, scoped, tag = 'scratch operand']
  %s0 = inlined_call_operand.hbm [shape: bf16[8,256], index: 0, kind: input, shape index: {}]
  %s1 = inlined_call_operand.hbm [shape: bf16[8,256], index: 1, kind: input, shape index: {}]
  %s2 = inlined_call_operand.hbm [shape: bf16[256,256], index: 2, kind: input, shape index: {}]
  %s3 = inlined_call_operand.vmem [shape: f32[1,256], index: 3, kind: input, shape index: {}]
  %s4 = inlined_call_operand.hbm [shape: bf16[256,256], index: 4, kind: input, shape index: {}]
  %s5 = inlined_call_operand.vmem [shape: f32[1,256], index: 5, kind: input, shape index: {}]
  %s6 = inlined_call_operand.hbm [shape: bf16[256,128], index: 6, kind: input, shape index: {}]
  %s7 = inlined_call_operand.vmem [shape: f32[1,128], index: 7, kind: input, shape index: {}]
  %s8 = inlined_call_operand.hbm [shape: bf16[128,128], index: 8, kind: input, shape index: {}]
  %s9 = inlined_call_operand.vmem [shape: f32[1,128], index: 9, kind: input, shape index: {}]
  %s10 = inlined_call_operand.hbm [shape: f32[8,128], index: 10, kind: output, shape index: {0}]
  %s11 = inlined_call_operand.hbm [shape: f32[8,128], index: 11, kind: output, shape index: {1}]
  %s12 = inlined_call_operand.hbm [shape: f32[8,128], index: 12, kind: output, shape index: {2}]
  %s13 = inlined_call_operand.hbm [shape: f32[8,128], index: 13, kind: output, shape index: {3}]
  %14 = xla_tuple %s10, %s11, %s12, %s13
  %s15 = sld [smem:[#allocation0]]
  $region110: #{tpu_custom_call.1} parent=0
    _
  %s17 = ssub.s32 1, %s15
  %s18 = scalar_select 0, %s17, %s15
  $region1: #{tpu_custom_call.1} parent=0
    #allocation3 [shape = 'u8[4096]{0}', space=vmem, size = 0x1000, scoped, tag = 'input window, operand 0, single buffered']
    #allocation4 [shape = 's32[1]{0}', space=sflag, size = 0x4, scoped, tag = 'scoped memory for tpu_custom_call.1']
    #allocation5 [shape = 's32[1]{0}', space=sflag, size = 0x4, scoped, tag = 'scoped memory for tpu_custom_call.1']
    #allocation6 [shape = 'u8[4096]{0}', space=vmem, size = 0x1000, scoped, tag = 'input window, operand 1, single buffered']
    #allocation7 [shape = 's32[1]{0}', space=sflag, size = 0x4, scoped, tag = 'scoped memory for tpu_custom_call.1']
    #allocation8 [shape = 'u8[131072]{0}', space=vmem, size = 0x20000, scoped, tag = 'input window, operand 2, single buffered']
    #allocation9 [shape = 'u8[131072]{0}', space=vmem, size = 0x20000, scoped, tag = 'input window, operand 4, single buffered']
    #allocation10 [shape = 's32[1]{0}', space=sflag, size = 0x4, scoped, tag = 'scoped memory for tpu_custom_call.1']
    #allocation11 [shape = 'u8[65536]{0}', space=vmem, size = 0x10000, scoped, tag = 'input window, operand 6, single buffered']
    #allocation12 [shape = 'u8[32768]{0}', space=vmem, size = 0x8000, scoped, tag = 'input window, operand 8, single buffered']
    #allocation13 [shape = 's32[1]{0}', space=sflag, size = 0x4, scoped, tag = 'scoped memory for tpu_custom_call.1']
    #allocation14 [shape = 'u8[4096]{0}', space=vmem, size = 0x1000, scoped, tag = 'output window, operand 0, single buffered']
    #allocation15 [shape = 'u8[4096]{0}', space=vmem, size = 0x1000, scoped, tag = 'output window, operand 1, single buffered']
    #allocation16 [shape = 's32[1]{0}', space=sflag, size = 0x4, scoped, tag = 'scoped memory for tpu_custom_call.1']
    #allocation17 [shape = 'u8[4096]{0}', space=vmem, size = 0x1000, scoped, tag = 'output window, operand 2, single buffered']
    #allocation18 [shape = 'u8[4096]{0}', space=vmem, size = 0x1000, scoped, tag = 'output window, operand 3, single buffered']
    #allocation19 [shape = 's32[1]{0}', space=sflag, size = 0x4, scoped, tag = 'scoped memory for tpu_custom_call.1']
    %19 = vsyncpa [#allocation4], 0
    %20 = vsyncpa [#allocation7], 0
    %21 = vsyncpa [#allocation10], 0
    %22 = vsyncpa [#allocation13], 0
    %23 = vsyncpa [#allocation5], 0
    %24 = vsyncpa [#allocation16], 0
    %25 = vsyncpa [#allocation19], 0
    // Predicated region
    $region2: #{tpu_custom_call.1} parent=1 // pred_check
      _
    $region3: #{tpu_custom_call.1} parent=1 // pred_check_branch
      %27 = sbr.rel (0) target = $region5
    $region4: #{tpu_custom_call.1} parent=1 // pred_region
      %29 = vsyncadd [#allocation4], 0
      %s31 = sshll.u32 %s0, 4
      %s32 = int_to_ptr.hbm [resolvable:$true] %s31
      %s33 = sshll.u32 [#allocation3], 4
      %s34 = int_to_ptr.vmem [resolvable:$true] %s33
      %36 = dma.hbm_to_vmem [thread:$0]  %s32, 128, %s34, [#allocation4]
    $region5: #{tpu_custom_call.1} parent=1 // pred_fallthru
      _
    // Predicated region
    $region6: #{tpu_custom_call.1} parent=1 // pred_check
      _
    $region7: #{tpu_custom_call.1} parent=1 // pred_check_branch
      %38 = sbr.rel (0) target = $region9
    $region8: #{tpu_custom_call.1} parent=1 // pred_region
      %40 = vsyncadd [#allocation7], 0
      %s42 = sshll.u32 %s1, 4
      %s43 = int_to_ptr.hbm [resolvable:$true] %s42
      %s44 = sshll.u32 [#allocation6], 4
      %s45 = int_to_ptr.vmem [resolvable:$true] %s44
      %47 = dma.hbm_to_vmem [thread:$0]  %s43, 128, %s45, [#allocation7]
    $region9: #{tpu_custom_call.1} parent=1 // pred_fallthru
      _
    // Predicated region
    $region10: #{tpu_custom_call.1} parent=1 // pred_check
      _
    $region11: #{tpu_custom_call.1} parent=1 // pred_check_branch
      %49 = sbr.rel (0) target = $region13
    $region12: #{tpu_custom_call.1} parent=1 // pred_region
      %51 = vsyncadd [#allocation7], 0
      %s52 = sshll.u32 %s2, 4
      %s53 = int_to_ptr.hbm [resolvable:$true] %s52
      %s54 = sshll.u32 [#allocation8], 4
      %s55 = int_to_ptr.vmem [resolvable:$true] %s54
      %60 = dma.hbm_to_vmem [thread:$0]  %s53, 4096, %s55, [#allocation7], 128, 128, 8
    $region13: #{tpu_custom_call.1} parent=1 // pred_fallthru
      _
    // Predicated region
    $region14: #{tpu_custom_call.1} parent=1 // pred_check
      _
    $region15: #{tpu_custom_call.1} parent=1 // pred_check_branch
      %62 = sbr.rel (0) target = $region17
    $region16: #{tpu_custom_call.1} parent=1 // pred_region
      _
    $region17: #{tpu_custom_call.1} parent=1 // pred_fallthru
      _
    // Predicated region
    $region18: #{tpu_custom_call.1} parent=1 // pred_check
      _
    $region19: #{tpu_custom_call.1} parent=1 // pred_check_branch
      %64 = sbr.rel (0) target = $region21
    $region20: #{tpu_custom_call.1} parent=1 // pred_region
      %66 = vsyncadd [#allocation10], 0
      %s67 = sshll.u32 %s4, 4
      %s68 = int_to_ptr.hbm [resolvable:$true] %s67
      %s69 = sshll.u32 [#allocation9], 4
      %s70 = int_to_ptr.vmem [resolvable:$true] %s69
      %75 = dma.hbm_to_vmem [thread:$0]  %s68, 4096, %s70, [#allocation10], 128, 128, 8
    $region21: #{tpu_custom_call.1} parent=1 // pred_fallthru
      _
    // Predicated region
    $region22: #{tpu_custom_call.1} parent=1 // pred_check
      _
    $region23: #{tpu_custom_call.1} parent=1 // pred_check_branch
      %77 = sbr.rel (0) target = $region25
    $region24: #{tpu_custom_call.1} parent=1 // pred_region
      _
    $region25: #{tpu_custom_call.1} parent=1 // pred_fallthru
      _
    // Predicated region
    $region26: #{tpu_custom_call.1} parent=1 // pred_check
      _
    $region27: #{tpu_custom_call.1} parent=1 // pred_check_branch
      %79 = sbr.rel (0) target = $region29
    $region28: #{tpu_custom_call.1} parent=1 // pred_region
      %81 = vsyncadd [#allocation10], 0
      %s82 = sshll.u32 %s6, 4
      %s83 = int_to_ptr.hbm [resolvable:$true] %s82
      %s84 = sshll.u32 [#allocation11], 4
      %s85 = int_to_ptr.vmem [resolvable:$true] %s84
      %90 = dma.hbm_to_vmem [thread:$0]  %s83, 2048, %s85, [#allocation10], 64, 64, 4
    $region29: #{tpu_custom_call.1} parent=1 // pred_fallthru
      _
    // Predicated region
    $region30: #{tpu_custom_call.1} parent=1 // pred_check
      _
    $region31: #{tpu_custom_call.1} parent=1 // pred_check_branch
      %92 = sbr.rel (0) target = $region33
    $region32: #{tpu_custom_call.1} parent=1 // pred_region
      _
    $region33: #{tpu_custom_call.1} parent=1 // pred_fallthru
      _
    // Predicated region
    $region34: #{tpu_custom_call.1} parent=1 // pred_check
      _
    $region35: #{tpu_custom_call.1} parent=1 // pred_check_branch
      %94 = sbr.rel (0) target = $region37
    $region36: #{tpu_custom_call.1} parent=1 // pred_region
      %96 = vsyncadd [#allocation13], 0
      %s97 = sshll.u32 %s8, 4
      %s98 = int_to_ptr.hbm [resolvable:$true] %s97
      %s99 = sshll.u32 [#allocation12], 4
      %s100 = int_to_ptr.vmem [resolvable:$true] %s99
      %105 = dma.hbm_to_vmem [thread:$0]  %s98, 1024, %s100, [#allocation13], 64, 64, 4
    $region37: #{tpu_custom_call.1} parent=1 // pred_fallthru
      _
    // Predicated region
    $region38: #{tpu_custom_call.1} parent=1 // pred_check
      _
    $region39: #{tpu_custom_call.1} parent=1 // pred_check_branch
      %107 = sbr.rel (0) target = $region41
    $region40: #{tpu_custom_call.1} parent=1 // pred_region
      _
    $region41: #{tpu_custom_call.1} parent=1 // pred_fallthru
      _
    // Predicated region
    $region42: #{tpu_custom_call.1} parent=1 // pred_check
      _
    $region43: #{tpu_custom_call.1} parent=1 // pred_check_branch
      %109 = sbr.rel (0) target = $region45
    $region44: #{tpu_custom_call.1} parent=1 // pred_region
      %111 = dma.done [#allocation4], 128
    $region45: #{tpu_custom_call.1} parent=1 // pred_fallthru
      _
    // Predicated region
    $region46: #{tpu_custom_call.1} parent=1 // pred_check
      _
    $region47: #{tpu_custom_call.1} parent=1 // pred_check_branch
      %113 = sbr.rel (0) target = $region49
    $region48: #{tpu_custom_call.1} parent=1 // pred_region
      %115 = dma.done [#allocation7], 128
    $region49: #{tpu_custom_call.1} parent=1 // pred_fallthru
      _
    // Predicated region
    $region50: #{tpu_custom_call.1} parent=1 // pred_check
      _
    $region51: #{tpu_custom_call.1} parent=1 // pred_check_branch
      %117 = sbr.rel (0) target = $region53
    $region52: #{tpu_custom_call.1} parent=1 // pred_region
      %119 = dma.done [#allocation7], 4096
    $region53: #{tpu_custom_call.1} parent=1 // pred_fallthru
      _
    // Predicated region
    $region54: #{tpu_custom_call.1} parent=1 // pred_check
      _
    $region55: #{tpu_custom_call.1} parent=1 // pred_check_branch
      %121 = sbr.rel (0) target = $region57
    $region56: #{tpu_custom_call.1} parent=1 // pred_region
      %123 = dma.done [#allocation10], 4096
    $region57: #{tpu_custom_call.1} parent=1 // pred_fallthru
      _
    // Predicated region
    $region58: #{tpu_custom_call.1} parent=1 // pred_check
      _
    $region59: #{tpu_custom_call.1} parent=1 // pred_check_branch
      %125 = sbr.rel (0) target = $region61
    $region60: #{tpu_custom_call.1} parent=1 // pred_region
      %127 = dma.done [#allocation10], 2048
    $region61: #{tpu_custom_call.1} parent=1 // pred_fallthru
      _
    // Predicated region
    $region62: #{tpu_custom_call.1} parent=1 // pred_check
      _
    $region63: #{tpu_custom_call.1} parent=1 // pred_check_branch
      %129 = sbr.rel (0) target = $region65
    $region64: #{tpu_custom_call.1} parent=1 // pred_region
      %131 = dma.done [#allocation13], 1024
    $region65: #{tpu_custom_call.1} parent=1 // pred_fallthru
      _
    %p132 = scmp.eq.s32.totalorder 0, 0
    // Predicated region
    $region66: #{tpu_custom_call.1} parent=1 // pred_check
      %p133 = pneg %p132
    $region67: #{tpu_custom_call.1} parent=1 // pred_check_branch
      %135 = sbr.rel (%p133) target = $region69
    $region68: #{tpu_custom_call.1} parent=1 // pred_region
      %136 = vst [vmem:[#allocation2] sm:$0xff] 0.0
      %137 = vst [vmem:[#allocation2 + $0x8] sm:$0xff] 0.0
      %138 = vst [vmem:[#allocation2 + $0x10] sm:$0xff] 0.0
      %139 = vst [vmem:[#allocation2 + $0x18] sm:$0xff] 0.0
    $region69: #{tpu_custom_call.1} parent=1 // pred_fallthru
      _
    %p140 = scmp.lt.s32.totalorder 0, 1
    // Predicated region
    $region70: #{tpu_custom_call.1} parent=1 // pred_check
      %p141 = pneg %p140
    $region71: #{tpu_custom_call.1} parent=1 // pred_check_branch
      %143 = sbr.rel (%p141) target = $region73
    $region72: #{tpu_custom_call.1} parent=1 // pred_region
      %v144 = vld [vmem:[#allocation2] sm:$0xff]
      %v145 = vld [vmem:[#allocation2 + $0x8] sm:$0xff]
      %v146 = vld [vmem:[#allocation3] sm:$0xff]
      %v147 = vld [vmem:[#allocation8] sm:$0xff]
      %v148 = vld [vmem:[#allocation8 + $0x8] sm:$0xff]
      %v149 = vld [vmem:[#allocation8 + $0x10] sm:$0xff]
      %v150 = vld [vmem:[#allocation8 + $0x18] sm:$0xff]
      %v151 = vld [vmem:[#allocation8 + $0x20] sm:$0xff]
      %v152 = vld [vmem:[#allocation8 + $0x28] sm:$0xff]
      %v153 = vld [vmem:[#allocation8 + $0x30] sm:$0xff]
      %v154 = vld [vmem:[#allocation8 + $0x38] sm:$0xff]
      %v155 = vld [vmem:[#allocation8 + $0x40] sm:$0xff]
      %v156 = vld [vmem:[#allocation8 + $0x48] sm:$0xff]
      %v157 = vld [vmem:[#allocation8 + $0x50] sm:$0xff]
      %v158 = vld [vmem:[#allocation8 + $0x58] sm:$0xff]
      %v159 = vld [vmem:[#allocation8 + $0x60] sm:$0xff]
      %v160 = vld [vmem:[#allocation8 + $0x68] sm:$0xff]
      %v161 = vld [vmem:[#allocation8 + $0x70] sm:$0xff]
      %v162 = vld [vmem:[#allocation8 + $0x78] sm:$0xff]
      %v163 = vld [vmem:[#allocation8 + $0x80] sm:$0xff]
      %v164 = vld [vmem:[#allocation8 + $0x88] sm:$0xff]
      %v165 = vld [vmem:[#allocation8 + $0x90] sm:$0xff]
      %v166 = vld [vmem:[#allocation8 + $0x98] sm:$0xff]
      %v167 = vld [vmem:[#allocation8 + $0xa0] sm:$0xff]
      %v168 = vld [vmem:[#allocation8 + $0xa8] sm:$0xff]
      %v169 = vld [vmem:[#allocation8 + $0xb0] sm:$0xff]
      %v170 = vld [vmem:[#allocation8 + $0xb8] sm:$0xff]
      %v171 = vld [vmem:[#allocation8 + $0xc0] sm:$0xff]
      %v172 = vld [vmem:[#allocation8 + $0xc8] sm:$0xff]
      %v173 = vld [vmem:[#allocation8 + $0xd0] sm:$0xff]
      %v174 = vld [vmem:[#allocation8 + $0xd8] sm:$0xff]
      %v175 = vld [vmem:[#allocation8 + $0xe0] sm:$0xff]
      %v176 = vld [vmem:[#allocation8 + $0xe8] sm:$0xff]
      %v177 = vld [vmem:[#allocation8 + $0xf0] sm:$0xff]
      %v178 = vld [vmem:[#allocation8 + $0xf8] sm:$0xff]
      %v180 = vunpack.c.l.b16 %v146
      %v181 = vunpack.c.h.b16 %v146
      %v182 = vpack.c.b16 %v180, %v180
      %v183 = vpack.c.b16 %v181, %v181
      %v218 = vunpack.c.l.b16 %v147
      %v219 = vunpack.c.h.b16 %v147
      %v220 = vunpack.c.l.b16 %v148
      %v221 = vunpack.c.h.b16 %v148
      %v222 = vunpack.c.l.b16 %v149
      %v223 = vunpack.c.h.b16 %v149
      %v224 = vunpack.c.l.b16 %v150
      %v225 = vunpack.c.h.b16 %v150
      %v226 = vunpack.c.l.b16 %v151
      %v227 = vunpack.c.h.b16 %v151
      %v228 = vunpack.c.l.b16 %v152
      %v229 = vunpack.c.h.b16 %v152
      %v230 = vunpack.c.l.b16 %v153
      %v231 = vunpack.c.h.b16 %v153
      %v232 = vunpack.c.l.b16 %v154
      %v233 = vunpack.c.h.b16 %v154
      %v234 = vunpack.c.l.b16 %v155
      %v235 = vunpack.c.h.b16 %v155
      %v236 = vunpack.c.l.b16 %v156
      %v237 = vunpack.c.h.b16 %v156
      %v238 = vunpack.c.l.b16 %v157
      %v239 = vunpack.c.h.b16 %v157
      %v240 = vunpack.c.l.b16 %v158
      %v241 = vunpack.c.h.b16 %v158
      %v242 = vunpack.c.l.b16 %v159
      %v243 = vunpack.c.h.b16 %v159
      %v244 = vunpack.c.l.b16 %v160
      %v245 = vunpack.c.h.b16 %v160
      %v246 = vunpack.c.l.b16 %v161
      %v247 = vunpack.c.h.b16 %v161
      %v248 = vunpack.c.l.b16 %v162
      %v249 = vunpack.c.h.b16 %v162
      %v250 = vunpack.c.l.b16 %v163
      %v251 = vunpack.c.h.b16 %v163
      %v252 = vunpack.c.l.b16 %v164
      %v253 = vunpack.c.h.b16 %v164
      %v254 = vunpack.c.l.b16 %v165
      %v255 = vunpack.c.h.b16 %v165
      %v256 = vunpack.c.l.b16 %v166
      %v257 = vunpack.c.h.b16 %v166
      %v258 = vunpack.c.l.b16 %v167
      %v259 = vunpack.c.h.b16 %v167
      %v260 = vunpack.c.l.b16 %v168
      %v261 = vunpack.c.h.b16 %v168
      %v262 = vunpack.c.l.b16 %v169
      %v263 = vunpack.c.h.b16 %v169
      %v264 = vunpack.c.l.b16 %v170
      %v265 = vunpack.c.h.b16 %v170
      %v266 = vunpack.c.l.b16 %v171
      %v267 = vunpack.c.h.b16 %v171
      %v268 = vunpack.c.l.b16 %v172
      %v269 = vunpack.c.h.b16 %v172
      %v270 = vunpack.c.l.b16 %v173
      %v271 = vunpack.c.h.b16 %v173
      %v272 = vunpack.c.l.b16 %v174
      %v273 = vunpack.c.h.b16 %v174
      %v274 = vunpack.c.l.b16 %v175
      %v275 = vunpack.c.h.b16 %v175
      %v276 = vunpack.c.l.b16 %v176
      %v277 = vunpack.c.h.b16 %v176
      %v278 = vunpack.c.l.b16 %v177
      %v279 = vunpack.c.h.b16 %v177
      %v280 = vunpack.c.l.b16 %v178
      %v281 = vunpack.c.h.b16 %v178
      %v282 = vpack.c.b16 %v220, %v218
      %v283 = vpack.c.b16 %v221, %v219
      %v284 = vpack.c.b16 %v224, %v222
      %v285 = vpack.c.b16 %v225, %v223
      %v286 = vpack.c.b16 %v228, %v226
      %v287 = vpack.c.b16 %v229, %v227
      %v288 = vpack.c.b16 %v232, %v230
      %v289 = vpack.c.b16 %v233, %v231
      %v290 = vpack.c.b16 %v236, %v234
      %v291 = vpack.c.b16 %v237, %v235
      %v292 = vpack.c.b16 %v240, %v238
      %v293 = vpack.c.b16 %v241, %v239
      %v294 = vpack.c.b16 %v244, %v242
      %v295 = vpack.c.b16 %v245, %v243
      %v296 = vpack.c.b16 %v248, %v246
      %v297 = vpack.c.b16 %v249, %v247
      %v298 = vpack.c.b16 %v252, %v250
      %v299 = vpack.c.b16 %v253, %v251
      %v300 = vpack.c.b16 %v256, %v254
      %v301 = vpack.c.b16 %v257, %v255
      %v302 = vpack.c.b16 %v260, %v258
      %v303 = vpack.c.b16 %v261, %v259
      %v304 = vpack.c.b16 %v264, %v262
      %v305 = vpack.c.b16 %v265, %v263
      %v306 = vpack.c.b16 %v268, %v266
      %v307 = vpack.c.b16 %v269, %v267
      %v308 = vpack.c.b16 %v272, %v270
      %v309 = vpack.c.b16 %v273, %v271
      %v310 = vpack.c.b16 %v276, %v274
      %v311 = vpack.c.b16 %v277, %v275
      %v312 = vpack.c.b16 %v280, %v278
      %v313 = vpack.c.b16 %v281, %v279
      %346 = vmatpush.bf16.msra.mxu0 %v296
      %347 = vmatpush.bf16.msra.mxu0 %v294
      %348 = vmatpush.bf16.msra.mxu0 %v292
      %349 = vmatpush.bf16.msra.mxu0 %v290
      %350 = vmatpush.bf16.msra.mxu0 %v288
      %351 = vmatpush.bf16.msra.mxu0 %v286
      %352 = vmatpush.bf16.msra.mxu0 %v284
      %353 = vmatpush.bf16.msra.mxu0 %v282
      %354 = vmatmul.bf16.gmra.mxu0 %v182
      %v355 = vpop.f32.mrf.mxu0
      %v356 = vadd.f32 0.0, %v355
      %v357 = vpop.f32.mrf.mxu0
      %358 = vdwg.mxu0
      %359 = vmatpush.bf16.msra.mxu0 %v312
      %360 = vmatpush.bf16.msra.mxu0 %v310
      %361 = vmatpush.bf16.msra.mxu0 %v308
      %362 = vmatpush.bf16.msra.mxu0 %v306
      %363 = vmatpush.bf16.msra.mxu0 %v304
      %364 = vmatpush.bf16.msra.mxu0 %v302
      %365 = vmatpush.bf16.msra.mxu0 %v300
      %366 = vmatpush.bf16.msra.mxu0 %v298
      %367 = vmatmul.bf16.gmra.mxu0 %v183
      %v368 = vpop.f32.mrf.mxu0
      %v369 = vadd.f32 %v356, %v368
      %v370 = vpop.f32.mrf.mxu0
      %371 = vdwg.mxu0
      %372 = vmatpush.bf16.msra.mxu0 %v297
      %373 = vmatpush.bf16.msra.mxu0 %v295
      %374 = vmatpush.bf16.msra.mxu0 %v293
      %375 = vmatpush.bf16.msra.mxu0 %v291
      %376 = vmatpush.bf16.msra.mxu0 %v289
      %377 = vmatpush.bf16.msra.mxu0 %v287
      %378 = vmatpush.bf16.msra.mxu0 %v285
      %379 = vmatpush.bf16.msra.mxu0 %v283
      %380 = vmatmul.bf16.gmra.mxu0 %v182
      %v381 = vpop.f32.mrf.mxu0
      %v382 = vadd.f32 0.0, %v381
      %v383 = vpop.f32.mrf.mxu0
      %384 = vdwg.mxu0
      %385 = vmatpush.bf16.msra.mxu0 %v313
      %386 = vmatpush.bf16.msra.mxu0 %v311
      %387 = vmatpush.bf16.msra.mxu0 %v309
      %388 = vmatpush.bf16.msra.mxu0 %v307
      %389 = vmatpush.bf16.msra.mxu0 %v305
      %390 = vmatpush.bf16.msra.mxu0 %v303
      %391 = vmatpush.bf16.msra.mxu0 %v301
      %392 = vmatpush.bf16.msra.mxu0 %v299
      %393 = vmatmul.bf16.gmra.mxu0 %v183
      %v394 = vpop.f32.mrf.mxu0
      %v395 = vadd.f32 %v382, %v394
      %v396 = vpop.f32.mrf.mxu0
      %397 = vdwg.mxu0
      %v398 = vadd.f32 %v144, %v369
      %v399 = vadd.f32 %v145, %v395
      %400 = vst [vmem:[#allocation2] sm:$0xff] %v398
      %401 = vst [vmem:[#allocation2 + $0x8] sm:$0xff] %v399
      %v402 = vld [vmem:[#allocation2 + $0x10] sm:$0xff]
      %v403 = vld [vmem:[#allocation2 + $0x18] sm:$0xff]
      %v404 = vld [vmem:[#allocation6] sm:$0xff]
      %v405 = vld [vmem:[#allocation9] sm:$0xff]
      %v406 = vld [vmem:[#allocation9 + $0x8] sm:$0xff]
      %v407 = vld [vmem:[#allocation9 + $0x10] sm:$0xff]
      %v408 = vld [vmem:[#allocation9 + $0x18] sm:$0xff]
      %v409 = vld [vmem:[#allocation9 + $0x20] sm:$0xff]
      %v410 = vld [vmem:[#allocation9 + $0x28] sm:$0xff]
      %v411 = vld [vmem:[#allocation9 + $0x30] sm:$0xff]
      %v412 = vld [vmem:[#allocation9 + $0x38] sm:$0xff]
      %v413 = vld [vmem:[#allocation9 + $0x40] sm:$0xff]
      %v414 = vld [vmem:[#allocation9 + $0x48] sm:$0xff]
      %v415 = vld [vmem:[#allocation9 + $0x50] sm:$0xff]
      %v416 = vld [vmem:[#allocation9 + $0x58] sm:$0xff]
      %v417 = vld [vmem:[#allocation9 + $0x60] sm:$0xff]
      %v418 = vld [vmem:[#allocation9 + $0x68] sm:$0xff]
      %v419 = vld [vmem:[#allocation9 + $0x70] sm:$0xff]
      %v420 = vld [vmem:[#allocation9 + $0x78] sm:$0xff]
      %v421 = vld [vmem:[#allocation9 + $0x80] sm:$0xff]
      %v422 = vld [vmem:[#allocation9 + $0x88] sm:$0xff]
      %v423 = vld [vmem:[#allocation9 + $0x90] sm:$0xff]
      %v424 = vld [vmem:[#allocation9 + $0x98] sm:$0xff]
      %v425 = vld [vmem:[#allocation9 + $0xa0] sm:$0xff]
      %v426 = vld [vmem:[#allocation9 + $0xa8] sm:$0xff]
      %v427 = vld [vmem:[#allocation9 + $0xb0] sm:$0xff]
      %v428 = vld [vmem:[#allocation9 + $0xb8] sm:$0xff]
      %v429 = vld [vmem:[#allocation9 + $0xc0] sm:$0xff]
      %v430 = vld [vmem:[#allocation9 + $0xc8] sm:$0xff]
      %v431 = vld [vmem:[#allocation9 + $0xd0] sm:$0xff]
      %v432 = vld [vmem:[#allocation9 + $0xd8] sm:$0xff]
      %v433 = vld [vmem:[#allocation9 + $0xe0] sm:$0xff]
      %v434 = vld [vmem:[#allocation9 + $0xe8] sm:$0xff]
      %v435 = vld [vmem:[#allocation9 + $0xf0] sm:$0xff]
      %v436 = vld [vmem:[#allocation9 + $0xf8] sm:$0xff]
      %v438 = vunpack.c.l.b16 %v404
      %v439 = vunpack.c.h.b16 %v404
      %v440 = vpack.c.b16 %v438, %v438
      %v441 = vpack.c.b16 %v439, %v439
      %v476 = vunpack.c.l.b16 %v405
      %v477 = vunpack.c.h.b16 %v405
      %v478 = vunpack.c.l.b16 %v406
      %v479 = vunpack.c.h.b16 %v406
      %v480 = vunpack.c.l.b16 %v407
      %v481 = vunpack.c.h.b16 %v407
      %v482 = vunpack.c.l.b16 %v408
      %v483 = vunpack.c.h.b16 %v408
      %v484 = vunpack.c.l.b16 %v409
      %v485 = vunpack.c.h.b16 %v409
      %v486 = vunpack.c.l.b16 %v410
      %v487 = vunpack.c.h.b16 %v410
      %v488 = vunpack.c.l.b16 %v411
      %v489 = vunpack.c.h.b16 %v411
      %v490 = vunpack.c.l.b16 %v412
      %v491 = vunpack.c.h.b16 %v412
      %v492 = vunpack.c.l.b16 %v413
      %v493 = vunpack.c.h.b16 %v413
      %v494 = vunpack.c.l.b16 %v414
      %v495 = vunpack.c.h.b16 %v414
      %v496 = vunpack.c.l.b16 %v415
      %v497 = vunpack.c.h.b16 %v415
      %v498 = vunpack.c.l.b16 %v416
      %v499 = vunpack.c.h.b16 %v416
      %v500 = vunpack.c.l.b16 %v417
      %v501 = vunpack.c.h.b16 %v417
      %v502 = vunpack.c.l.b16 %v418
      %v503 = vunpack.c.h.b16 %v418
      %v504 = vunpack.c.l.b16 %v419
      %v505 = vunpack.c.h.b16 %v419
      %v506 = vunpack.c.l.b16 %v420
      %v507 = vunpack.c.h.b16 %v420
      %v508 = vunpack.c.l.b16 %v421
      %v509 = vunpack.c.h.b16 %v421
      %v510 = vunpack.c.l.b16 %v422
      %v511 = vunpack.c.h.b16 %v422
      %v512 = vunpack.c.l.b16 %v423
      %v513 = vunpack.c.h.b16 %v423
      %v514 = vunpack.c.l.b16 %v424
      %v515 = vunpack.c.h.b16 %v424
      %v516 = vunpack.c.l.b16 %v425
      %v517 = vunpack.c.h.b16 %v425
      %v518 = vunpack.c.l.b16 %v426
      %v519 = vunpack.c.h.b16 %v426
      %v520 = vunpack.c.l.b16 %v427
      %v521 = vunpack.c.h.b16 %v427
      %v522 = vunpack.c.l.b16 %v428
      %v523 = vunpack.c.h.b16 %v428
      %v524 = vunpack.c.l.b16 %v429
      %v525 = vunpack.c.h.b16 %v429
      %v526 = vunpack.c.l.b16 %v430
      %v527 = vunpack.c.h.b16 %v430
      %v528 = vunpack.c.l.b16 %v431
      %v529 = vunpack.c.h.b16 %v431
      %v530 = vunpack.c.l.b16 %v432
      %v531 = vunpack.c.h.b16 %v432
      %v532 = vunpack.c.l.b16 %v433
      %v533 = vunpack.c.h.b16 %v433
      %v534 = vunpack.c.l.b16 %v434
      %v535 = vunpack.c.h.b16 %v434
      %v536 = vunpack.c.l.b16 %v435
      %v537 = vunpack.c.h.b16 %v435
      %v538 = vunpack.c.l.b16 %v436
      %v539 = vunpack.c.h.b16 %v436
      %v540 = vpack.c.b16 %v478, %v476
      %v541 = vpack.c.b16 %v479, %v477
      %v542 = vpack.c.b16 %v482, %v480
      %v543 = vpack.c.b16 %v483, %v481
      %v544 = vpack.c.b16 %v486, %v484
      %v545 = vpack.c.b16 %v487, %v485
      %v546 = vpack.c.b16 %v490, %v488
      %v547 = vpack.c.b16 %v491, %v489
      %v548 = vpack.c.b16 %v494, %v492
      %v549 = vpack.c.b16 %v495, %v493
      %v550 = vpack.c.b16 %v498, %v496
      %v551 = vpack.c.b16 %v499, %v497
      %v552 = vpack.c.b16 %v502, %v500
      %v553 = vpack.c.b16 %v503, %v501
      %v554 = vpack.c.b16 %v506, %v504
      %v555 = vpack.c.b16 %v507, %v505
      %v556 = vpack.c.b16 %v510, %v508
      %v557 = vpack.c.b16 %v511, %v509
      %v558 = vpack.c.b16 %v514, %v512
      %v559 = vpack.c.b16 %v515, %v513
      %v560 = vpack.c.b16 %v518, %v516
      %v561 = vpack.c.b16 %v519, %v517
      %v562 = vpack.c.b16 %v522, %v520
      %v563 = vpack.c.b16 %v523, %v521
      %v564 = vpack.c.b16 %v526, %v524
      %v565 = vpack.c.b16 %v527, %v525
      %v566 = vpack.c.b16 %v530, %v528
      %v567 = vpack.c.b16 %v531, %v529
      %v568 = vpack.c.b16 %v534, %v532
      %v569 = vpack.c.b16 %v535, %v533
      %v570 = vpack.c.b16 %v538, %v536
      %v571 = vpack.c.b16 %v539, %v537
      %604 = vmatpush.bf16.msra.mxu0 %v554
      %605 = vmatpush.bf16.msra.mxu0 %v552
      %606 = vmatpush.bf16.msra.mxu0 %v550
      %607 = vmatpush.bf16.msra.mxu0 %v548
      %608 = vmatpush.bf16.msra.mxu0 %v546
      %609 = vmatpush.bf16.msra.mxu0 %v544
      %610 = vmatpush.bf16.msra.mxu0 %v542
      %611 = vmatpush.bf16.msra.mxu0 %v540
      %612 = vmatmul.bf16.gmra.mxu0 %v440
      %v613 = vpop.f32.mrf.mxu0
      %v614 = vadd.f32 0.0, %v613
      %v615 = vpop.f32.mrf.mxu0
      %616 = vdwg.mxu0
      %617 = vmatpush.bf16.msra.mxu0 %v570
      %618 = vmatpush.bf16.msra.mxu0 %v568
      %619 = vmatpush.bf16.msra.mxu0 %v566
      %620 = vmatpush.bf16.msra.mxu0 %v564
      %621 = vmatpush.bf16.msra.mxu0 %v562
      %622 = vmatpush.bf16.msra.mxu0 %v560
      %623 = vmatpush.bf16.msra.mxu0 %v558
      %624 = vmatpush.bf16.msra.mxu0 %v556
      %625 = vmatmul.bf16.gmra.mxu0 %v441
      %v626 = vpop.f32.mrf.mxu0
      %v627 = vadd.f32 %v614, %v626
      %v628 = vpop.f32.mrf.mxu0
      %629 = vdwg.mxu0
      %630 = vmatpush.bf16.msra.mxu0 %v555
      %631 = vmatpush.bf16.msra.mxu0 %v553
      %632 = vmatpush.bf16.msra.mxu0 %v551
      %633 = vmatpush.bf16.msra.mxu0 %v549
      %634 = vmatpush.bf16.msra.mxu0 %v547
      %635 = vmatpush.bf16.msra.mxu0 %v545
      %636 = vmatpush.bf16.msra.mxu0 %v543
      %637 = vmatpush.bf16.msra.mxu0 %v541
      %638 = vmatmul.bf16.gmra.mxu0 %v440
      %v639 = vpop.f32.mrf.mxu0
      %v640 = vadd.f32 0.0, %v639
      %v641 = vpop.f32.mrf.mxu0
      %642 = vdwg.mxu0
      %643 = vmatpush.bf16.msra.mxu0 %v571
      %644 = vmatpush.bf16.msra.mxu0 %v569
      %645 = vmatpush.bf16.msra.mxu0 %v567
      %646 = vmatpush.bf16.msra.mxu0 %v565
      %647 = vmatpush.bf16.msra.mxu0 %v563
      %648 = vmatpush.bf16.msra.mxu0 %v561
      %649 = vmatpush.bf16.msra.mxu0 %v559
      %650 = vmatpush.bf16.msra.mxu0 %v557
      %651 = vmatmul.bf16.gmra.mxu0 %v441
      %v652 = vpop.f32.mrf.mxu0
      %v653 = vadd.f32 %v640, %v652
      %v654 = vpop.f32.mrf.mxu0
      %655 = vdwg.mxu0
      %v656 = vadd.f32 %v402, %v627
      %v657 = vadd.f32 %v403, %v653
      %658 = vst [vmem:[#allocation2 + $0x10] sm:$0xff] %v656
      %659 = vst [vmem:[#allocation2 + $0x18] sm:$0xff] %v657
    $region73: #{tpu_custom_call.1} parent=1 // pred_fallthru
      _
    // Predicated region
    $region74: #{tpu_custom_call.1} parent=1 // pred_check
      %p660 = pneg %p132
    $region75: #{tpu_custom_call.1} parent=1 // pred_check_branch
      %662 = sbr.rel (%p660) target = $region77
    $region76: #{tpu_custom_call.1} parent=1 // pred_region
      %v663 = vld [vmem:[#allocation2] sm:$0xff]
      %v664 = vld [vmem:[#allocation2 + $0x8] sm:$0xff]
      %v665 = vld [vmem:[%s3] sm:$0x3]
      %v667 = vperm.slane %v665, 0
      %v668 = vperm.slane %v665, 1
      %v671 = vadd.f32 %v663, %v667
      %v672 = vadd.f32 %v664, %v668
      %v673 = vmax.f32 %v671, 0.0
      %v674 = vmax.f32 %v672, 0.0
      %675 = vst [vmem:[#allocation2] sm:$0xff] %v673
      %676 = vst [vmem:[#allocation2 + $0x8] sm:$0xff] %v674
      %v677 = vld [vmem:[#allocation2 + $0x10] sm:$0xff]
      %v678 = vld [vmem:[#allocation2 + $0x18] sm:$0xff]
      %v679 = vld [vmem:[%s5] sm:$0x3]
      %v681 = vperm.slane %v679, 0
      %v682 = vperm.slane %v679, 1
      %v685 = vadd.f32 %v677, %v681
      %v686 = vadd.f32 %v678, %v682
      %v687 = vmax.f32 %v685, 0.0
      %v688 = vmax.f32 %v686, 0.0
      %689 = vst [vmem:[#allocation2 + $0x10] sm:$0xff] %v687
      %690 = vst [vmem:[#allocation2 + $0x18] sm:$0xff] %v688
      %v691 = vld [vmem:[#allocation2] sm:$0xff]
      %v692 = vld [vmem:[#allocation2 + $0x8] sm:$0xff]
      %v693 = vld [vmem:[#allocation2 + $0x10] sm:$0xff]
      %v694 = vld [vmem:[#allocation2 + $0x18] sm:$0xff]
      %v695 = vpack.c.bf16 %v693, %v691
      %v696 = vpack.c.bf16 %v694, %v692
      %v697 = vld [vmem:[#allocation11] sm:$0xf]
      %v698 = vld [vmem:[#allocation11 + $0x4] sm:$0xf]
      %v699 = vld [vmem:[#allocation11 + $0x8] sm:$0xf]
      %v700 = vld [vmem:[#allocation11 + $0xc] sm:$0xf]
      %v701 = vld [vmem:[#allocation11 + $0x10] sm:$0xf]
      %v702 = vld [vmem:[#allocation11 + $0x14] sm:$0xf]
      %v703 = vld [vmem:[#allocation11 + $0x18] sm:$0xf]
      %v704 = vld [vmem:[#allocation11 + $0x1c] sm:$0xf]
      %v705 = vld [vmem:[#allocation11 + $0x20] sm:$0xf]
      %v706 = vld [vmem:[#allocation11 + $0x24] sm:$0xf]
      %v707 = vld [vmem:[#allocation11 + $0x28] sm:$0xf]
      %v708 = vld [vmem:[#allocation11 + $0x2c] sm:$0xf]
      %v709 = vld [vmem:[#allocation11 + $0x30] sm:$0xf]
      %v710 = vld [vmem:[#allocation11 + $0x34] sm:$0xf]
      %v711 = vld [vmem:[#allocation11 + $0x38] sm:$0xf]
      %v712 = vld [vmem:[#allocation11 + $0x3c] sm:$0xf]
      %v713 = vld [vmem:[#allocation11 + $0x40] sm:$0xf]
      %v714 = vld [vmem:[#allocation11 + $0x44] sm:$0xf]
      %v715 = vld [vmem:[#allocation11 + $0x48] sm:$0xf]
      %v716 = vld [vmem:[#allocation11 + $0x4c] sm:$0xf]
      %v717 = vld [vmem:[#allocation11 + $0x50] sm:$0xf]
      %v718 = vld [vmem:[#allocation11 + $0x54] sm:$0xf]
      %v719 = vld [vmem:[#allocation11 + $0x58] sm:$0xf]
      %v720 = vld [vmem:[#allocation11 + $0x5c] sm:$0xf]
      %v721 = vld [vmem:[#allocation11 + $0x60] sm:$0xf]
      %v722 = vld [vmem:[#allocation11 + $0x64] sm:$0xf]
      %v723 = vld [vmem:[#allocation11 + $0x68] sm:$0xf]
      %v724 = vld [vmem:[#allocation11 + $0x6c] sm:$0xf]
      %v725 = vld [vmem:[#allocation11 + $0x70] sm:$0xf]
      %v726 = vld [vmem:[#allocation11 + $0x74] sm:$0xf]
      %v727 = vld [vmem:[#allocation11 + $0x78] sm:$0xf]
      %v728 = vld [vmem:[#allocation11 + $0x7c] sm:$0xf]
      %v729 = vld [vmem:[%s7] sm:$0x1]
      %v731 = vperm.slane %v729, 0
      %v765 = vunpack.c.l.b16 %v697
      %v766 = vunpack.c.l.b16 %v698
      %v767 = vunpack.c.l.b16 %v699
      %v768 = vunpack.c.l.b16 %v700
      %v769 = vunpack.c.l.b16 %v701
      %v770 = vunpack.c.l.b16 %v702
      %v771 = vunpack.c.l.b16 %v703
      %v772 = vunpack.c.l.b16 %v704
      %v773 = vunpack.c.l.b16 %v705
      %v774 = vunpack.c.l.b16 %v706
      %v775 = vunpack.c.l.b16 %v707
      %v776 = vunpack.c.l.b16 %v708
      %v777 = vunpack.c.l.b16 %v709
      %v778 = vunpack.c.l.b16 %v710
      %v779 = vunpack.c.l.b16 %v711
      %v780 = vunpack.c.l.b16 %v712
      %v781 = vunpack.c.l.b16 %v713
      %v782 = vunpack.c.l.b16 %v714
      %v783 = vunpack.c.l.b16 %v715
      %v784 = vunpack.c.l.b16 %v716
      %v785 = vunpack.c.l.b16 %v717
      %v786 = vunpack.c.l.b16 %v718
      %v787 = vunpack.c.l.b16 %v719
      %v788 = vunpack.c.l.b16 %v720
      %v789 = vunpack.c.l.b16 %v721
      %v790 = vunpack.c.l.b16 %v722
      %v791 = vunpack.c.l.b16 %v723
      %v792 = vunpack.c.l.b16 %v724
      %v793 = vunpack.c.l.b16 %v725
      %v794 = vunpack.c.l.b16 %v726
      %v795 = vunpack.c.l.b16 %v727
      %v796 = vunpack.c.l.b16 %v728
      %v797 = vpack.c.b16 %v766, %v765
      %v798 = vpack.c.b16 %v768, %v767
      %v799 = vpack.c.b16 %v770, %v769
      %v800 = vpack.c.b16 %v772, %v771
      %v801 = vpack.c.b16 %v774, %v773
      %v802 = vpack.c.b16 %v776, %v775
      %v803 = vpack.c.b16 %v778, %v777
      %v804 = vpack.c.b16 %v780, %v779
      %v805 = vpack.c.b16 %v782, %v781
      %v806 = vpack.c.b16 %v784, %v783
      %v807 = vpack.c.b16 %v786, %v785
      %v808 = vpack.c.b16 %v788, %v787
      %v809 = vpack.c.b16 %v790, %v789
      %v810 = vpack.c.b16 %v792, %v791
      %v811 = vpack.c.b16 %v794, %v793
      %v812 = vpack.c.b16 %v796, %v795
      %829 = vmatpush.bf16.msra.mxu0 %v804
      %830 = vmatpush.bf16.msra.mxu0 %v803
      %831 = vmatpush.bf16.msra.mxu0 %v802
      %832 = vmatpush.bf16.msra.mxu0 %v801
      %833 = vmatpush.bf16.msra.mxu0 %v800
      %834 = vmatpush.bf16.msra.mxu0 %v799
      %835 = vmatpush.bf16.msra.mxu0 %v798
      %836 = vmatpush.bf16.msra.mxu0 %v797
      %837 = vmatmul.bf16.gmra.mxu0 %v695
      %v838 = vpop.f32.mrf.mxu0
      %v839 = vadd.f32 %v731, %v838
      %v840 = vpop.f32.mrf.mxu0
      %v841 = vadd.f32 %v731, %v840
      %842 = vdwg.mxu0
      %843 = vmatpush.bf16.msra.mxu0 %v812
      %844 = vmatpush.bf16.msra.mxu0 %v811
      %845 = vmatpush.bf16.msra.mxu0 %v810
      %846 = vmatpush.bf16.msra.mxu0 %v809
      %847 = vmatpush.bf16.msra.mxu0 %v808
      %848 = vmatpush.bf16.msra.mxu0 %v807
      %849 = vmatpush.bf16.msra.mxu0 %v806
      %850 = vmatpush.bf16.msra.mxu0 %v805
      %851 = vmatmul.bf16.gmra.mxu0 %v696
      %v852 = vpop.f32.mrf.mxu0
      %v853 = vadd.f32 %v839, %v852
      %v854 = vpop.f32.mrf.mxu0
      %v855 = vadd.f32 %v841, %v854
      %856 = vdwg.mxu0
      %v857 = vmax.f32 %v853, 0.0
      %v858 = vmax.f32 %v855, 0.0
      %v859 = vmul.f32 %v857, %v857
      %v860 = vmul.f32 %v858, %v858
      %861 = vadd.xlane.f32.xlu0 %v859
      %v862 = vpop.xlane.xlu0 %861
      %863 = vadd.xlane.f32.xlu0 %v860
      %v864 = vpop.xlane.xlu0 %863
      %v865 = vrsqrt.pop %v862
      %v866 = vmul.f32 %v865, %v862
      %v867 = vmul.f32 %v866, %v865
      %v868 = vmul.f32 0.5, %v867
      %v869 = vsub.f32 1.5, %v868
      %v870 = vmul.f32 %v865, %v869
      %vm871 = vweird.f32 %v862
      %vm872 = vweird.f32 %v865
      %vm873 = vmor %vm871, %vm872
      %v874 = vsel %vm873, %v865, %v870
      %v875 = vrsqrt.pop %v864
      %v876 = vmul.f32 %v875, %v864
      %v877 = vmul.f32 %v876, %v875
      %v878 = vmul.f32 0.5, %v877
      %v879 = vsub.f32 1.5, %v878
      %v880 = vmul.f32 %v875, %v879
      %vm881 = vweird.f32 %v864
      %vm882 = vweird.f32 %v875
      %vm883 = vmor %vm881, %vm882
      %v884 = vsel %vm883, %v875, %v880
      %v885 = vmul.f32 %v857, %v874
      %v886 = vmul.f32 %v858, %v884
      %v887 = vpack.c.bf16 %v886, %v885
      %v888 = vld [vmem:[#allocation12] sm:$0xf]
      %v889 = vld [vmem:[#allocation12 + $0x4] sm:$0xf]
      %v890 = vld [vmem:[#allocation12 + $0x8] sm:$0xf]
      %v891 = vld [vmem:[#allocation12 + $0xc] sm:$0xf]
      %v892 = vld [vmem:[#allocation12 + $0x10] sm:$0xf]
      %v893 = vld [vmem:[#allocation12 + $0x14] sm:$0xf]
      %v894 = vld [vmem:[#allocation12 + $0x18] sm:$0xf]
      %v895 = vld [vmem:[#allocation12 + $0x1c] sm:$0xf]
      %v896 = vld [vmem:[#allocation12 + $0x20] sm:$0xf]
      %v897 = vld [vmem:[#allocation12 + $0x24] sm:$0xf]
      %v898 = vld [vmem:[#allocation12 + $0x28] sm:$0xf]
      %v899 = vld [vmem:[#allocation12 + $0x2c] sm:$0xf]
      %v900 = vld [vmem:[#allocation12 + $0x30] sm:$0xf]
      %v901 = vld [vmem:[#allocation12 + $0x34] sm:$0xf]
      %v902 = vld [vmem:[#allocation12 + $0x38] sm:$0xf]
      %v903 = vld [vmem:[#allocation12 + $0x3c] sm:$0xf]
      %v904 = vld [vmem:[%s9] sm:$0x1]
      %v906 = vperm.slane %v904, 0
      %v924 = vunpack.c.l.b16 %v888
      %v925 = vunpack.c.l.b16 %v889
      %v926 = vunpack.c.l.b16 %v890
      %v927 = vunpack.c.l.b16 %v891
      %v928 = vunpack.c.l.b16 %v892
      %v929 = vunpack.c.l.b16 %v893
      %v930 = vunpack.c.l.b16 %v894
      %v931 = vunpack.c.l.b16 %v895
      %v932 = vunpack.c.l.b16 %v896
      %v933 = vunpack.c.l.b16 %v897
      %v934 = vunpack.c.l.b16 %v898
      %v935 = vunpack.c.l.b16 %v899
      %v936 = vunpack.c.l.b16 %v900
      %v937 = vunpack.c.l.b16 %v901
      %v938 = vunpack.c.l.b16 %v902
      %v939 = vunpack.c.l.b16 %v903
      %v940 = vpack.c.b16 %v925, %v924
      %v941 = vpack.c.b16 %v927, %v926
      %v942 = vpack.c.b16 %v929, %v928
      %v943 = vpack.c.b16 %v931, %v930
      %v944 = vpack.c.b16 %v933, %v932
      %v945 = vpack.c.b16 %v935, %v934
      %v946 = vpack.c.b16 %v937, %v936
      %v947 = vpack.c.b16 %v939, %v938
      %956 = vmatpush.bf16.msra.mxu0 %v947
      %957 = vmatpush.bf16.msra.mxu0 %v946
      %958 = vmatpush.bf16.msra.mxu0 %v945
      %959 = vmatpush.bf16.msra.mxu0 %v944
      %960 = vmatpush.bf16.msra.mxu0 %v943
      %961 = vmatpush.bf16.msra.mxu0 %v942
      %962 = vmatpush.bf16.msra.mxu0 %v941
      %963 = vmatpush.bf16.msra.mxu0 %v940
      %964 = vmatmul.bf16.gmra.mxu0 %v887
      %v965 = vpop.f32.mrf.mxu0
      %v966 = vadd.f32 %v906, %v965
      %v967 = vpop.f32.mrf.mxu0
      %v968 = vadd.f32 %v906, %v967
      %969 = vdwg.mxu0
      %970 = vst [vmem:[#allocation14] sm:$0xff] %v885
      %971 = vst [vmem:[#allocation15] sm:$0xff] %v886
      %972 = vst [vmem:[#allocation17] sm:$0xff] %v966
      %973 = vst [vmem:[#allocation18] sm:$0xff] %v968
    $region77: #{tpu_custom_call.1} parent=1 // pred_fallthru
      _
    // Predicated region
    $region78: #{tpu_custom_call.1} parent=1 // pred_check
      _
    $region79: #{tpu_custom_call.1} parent=1 // pred_check_branch
      %975 = sbr.rel (0) target = $region81
    $region80: #{tpu_custom_call.1} parent=1 // pred_region
      %977 = vsyncadd [#allocation5], 0
      %s979 = sshll.u32 [#allocation14], 4
      %s980 = int_to_ptr.vmem [resolvable:$true] %s979
      %s981 = sshll.u32 %s10, 4
      %s982 = int_to_ptr.hbm [resolvable:$true] %s981
      %984 = dma.vmem_to_hbm [thread:$0]  %s980, 128, %s982, [#allocation5]
    $region81: #{tpu_custom_call.1} parent=1 // pred_fallthru
      _
    // Predicated region
    $region82: #{tpu_custom_call.1} parent=1 // pred_check
      _
    $region83: #{tpu_custom_call.1} parent=1 // pred_check_branch
      %986 = sbr.rel (0) target = $region85
    $region84: #{tpu_custom_call.1} parent=1 // pred_region
      %988 = vsyncadd [#allocation16], 0
      %s990 = sshll.u32 [#allocation15], 4
      %s991 = int_to_ptr.vmem [resolvable:$true] %s990
      %s992 = sshll.u32 %s11, 4
      %s993 = int_to_ptr.hbm [resolvable:$true] %s992
      %995 = dma.vmem_to_hbm [thread:$0]  %s991, 128, %s993, [#allocation16]
    $region85: #{tpu_custom_call.1} parent=1 // pred_fallthru
      _
    // Predicated region
    $region86: #{tpu_custom_call.1} parent=1 // pred_check
      _
    $region87: #{tpu_custom_call.1} parent=1 // pred_check_branch
      %997 = sbr.rel (0) target = $region89
    $region88: #{tpu_custom_call.1} parent=1 // pred_region
      %999 = vsyncadd [#allocation16], 0
      %s1001 = sshll.u32 [#allocation17], 4
      %s1002 = int_to_ptr.vmem [resolvable:$true] %s1001
      %s1003 = sshll.u32 %s12, 4
      %s1004 = int_to_ptr.hbm [resolvable:$true] %s1003
      %1006 = dma.vmem_to_hbm [thread:$0]  %s1002, 128, %s1004, [#allocation16]
    $region89: #{tpu_custom_call.1} parent=1 // pred_fallthru
      _
    // Predicated region
    $region90: #{tpu_custom_call.1} parent=1 // pred_check
      _
    $region91: #{tpu_custom_call.1} parent=1 // pred_check_branch
      %1008 = sbr.rel (0) target = $region93
    $region92: #{tpu_custom_call.1} parent=1 // pred_region
      %1010 = vsyncadd [#allocation19], 0
      %s1012 = sshll.u32 [#allocation18], 4
      %s1013 = int_to_ptr.vmem [resolvable:$true] %s1012
      %s1014 = sshll.u32 %s13, 4
      %s1015 = int_to_ptr.hbm [resolvable:$true] %s1014
      %1017 = dma.vmem_to_hbm [thread:$0]  %s1013, 128, %s1015, [#allocation19]
    $region93: #{tpu_custom_call.1} parent=1 // pred_fallthru
      _
    // Predicated region
    $region94: #{tpu_custom_call.1} parent=1 // pred_check
      _
    $region95: #{tpu_custom_call.1} parent=1 // pred_check_branch
      %1019 = sbr.rel (0) target = $region97
    $region96: #{tpu_custom_call.1} parent=1 // pred_region
      %1021 = dma.done [#allocation5], 128
    $region97: #{tpu_custom_call.1} parent=1 // pred_fallthru
      _
    // Predicated region
    $region98: #{tpu_custom_call.1} parent=1 // pred_check
      _
    $region99: #{tpu_custom_call.1} parent=1 // pred_check_branch
      %1023 = sbr.rel (0) target = $region101
    $region100: #{tpu_custom_call.1} parent=1 // pred_region
      %1025 = dma.done [#allocation16], 128
    $region101: #{tpu_custom_call.1} parent=1 // pred_fallthru
      _
    // Predicated region
    $region102: #{tpu_custom_call.1} parent=1 // pred_check
      _
    $region103: #{tpu_custom_call.1} parent=1 // pred_check_branch
      %1027 = sbr.rel (0) target = $region105
    $region104: #{tpu_custom_call.1} parent=1 // pred_region
      %1029 = dma.done [#allocation16], 128
    $region105: #{tpu_custom_call.1} parent=1 // pred_fallthru
      _
    // Predicated region
    $region106: #{tpu_custom_call.1} parent=1 // pred_check
      _
    $region107: #{tpu_custom_call.1} parent=1 // pred_check_branch
      %1031 = sbr.rel (0) target = $region109
    $region108: #{tpu_custom_call.1} parent=1 // pred_region
      %1033 = dma.done [#allocation19], 128
    $region109: #{tpu_custom_call.1} parent=1 // pred_fallthru
      _
    %1034 = vsyncpa [#allocation4], 1
    %1035 = vsyncpa [#allocation7], 1
    %1036 = vsyncpa [#allocation10], 1
    %1037 = vsyncpa [#allocation13], 1
    %1038 = vsyncpa [#allocation5], 1
    %1039 = vsyncpa [#allocation16], 1
    %1040 = vsyncpa [#allocation19], 1

</llo_original>
